<compile_context>
chip_gen: v5e
topology: v5e:2x2
jax: 0.10.0
libtpu: 0.0.40
codegen_flags: <defaults>
</compile_context>

<pallas_src>
import functools

import jax
import jax.numpy as jnp
from jax.experimental import pallas as pl
from jax.experimental.pallas import tpu as pltpu


_NUM_CORES = 2        # v7x has 2 TensorCores/chip; harmless (serial) on v5e/v6e.
_MAX_ROW_TILE = 2048  # keeps per-step VMEM modest on every generation.


def _vmem_caps():
    """Return (pipeline budget bytes, vmem_limit_bytes), generation aware."""
    cap = 64 * 1024 * 1024            # conservative default: v7x (64 MiB / TC)
    try:
        info = pltpu.get_tpu_info()
        cap = int(getattr(info, "vmem_capacity_bytes", cap))
    except Exception:
        pass
    budget = min(cap // 4, 24 * 1024 * 1024)
    limit = max(32 * 1024 * 1024, min(cap // 2, 2 * budget + 8 * 1024 * 1024))
    return budget, limit


def _round_down8(x):
    return max(8, (x // 8) * 8)


def _pick_row_tile(n_rows, lane_width, n_bufs, budget_bytes):
    """Largest multiple-of-8 row tile keeping n_bufs tile copies under budget."""
    bytes_per_row = max(1, lane_width) * 4
    t = budget_bytes // (n_bufs * bytes_per_row)
    t = int(min(t, _MAX_ROW_TILE, n_rows))
    return _round_down8(t)


def _prepare_layout(arrs, n, c):
    """Lane-dense (rows, lanes) view when cheap; pad rows so rows >= 8."""
    g = 128 // c if (c < 128 and 128 % c == 0) else 1
    # keep the unrolled per-chunk mask loop cheap relative to the HBM stream
    if g > 4 or (n % g) != 0:
        g = 1
    if g > 1:
        arrs = [a.reshape(n // g, 128) for a in arrs]   # free row-major reshape
    rows, lanes = arrs[0].shape
    if rows < 8:                                        # tiny-problem fallback
        pad = 8 - rows
        arrs = [jnp.pad(a, ((0, pad), (0, 0))) for a in arrs]
        rows += pad
    return arrs, rows, lanes, g


def _bce_elementwise(x, y):
    # numerically stable binary_cross_entropy_with_logits, element-wise:
    #   max(x, 0) - x*y + log(1 + exp(-|x|))
    return jnp.maximum(x, 0.0) - x * y + jnp.log(1.0 + jnp.exp(-jnp.abs(x)))


def _reduce_kernel(x_ref, y_ref, w_ref, loss_out_ref, cnt_out_ref,
                   acc_loss_ref, acc_cnt_ref, *, chunk, total_rows):
    """Accumulate masked per-element loss and masked-row count for mean/sum."""
    j = pl.program_id(1)
    nj = pl.num_programs(1)

    @pl.when(j == 0)
    def _init():
        acc_loss_ref[...] = jnp.zeros_like(acc_loss_ref)
        acc_cnt_ref[...] = jnp.zeros_like(acc_cnt_ref)

    x = x_ref[...].astype(jnp.float32)
    y = y_ref[...].astype(jnp.float32)
    w = w_ref[...].astype(jnp.float32)
    rows, lanes = x.shape
    g_chunks = lanes // chunk

    loss = _bce_elementwise(x, y)                        # (rows, lanes)

    lane_ids = jax.lax.broadcasted_iota(jnp.int32, (rows, lanes), 1)
    if g_chunks == 1:
        # one logical sample per tile row
        wsum = jnp.sum(w, axis=-1, keepdims=True)        # (rows, 1)
        first_lane = lane_ids == 0
    else:
        # g_chunks logical samples packed along the 128 lanes of each tile row
        wsum = jnp.zeros((rows, lanes), jnp.float32)
        for g in range(g_chunks):
            sel = (lane_ids >= g * chunk) & (lane_ids < (g + 1) * chunk)
            s = jnp.sum(jnp.where(sel, w, 0.0), axis=-1, keepdims=True)
            wsum = wsum + jnp.where(sel, s, 0.0)
        first_lane = (lane_ids & (chunk - 1)) == 0       # chunk is a power of 2

    # validity mask for the (possibly out-of-bounds / clamped) boundary blocks
    block = pl.program_id(0) * nj + j                    # logical row-block id
    row_ids = block * rows + jax.lax.broadcasted_iota(jnp.int32, (rows, lanes), 0)
    valid = row_ids < total_rows

    mask = (wsum != 0.0) & valid
    # pure vector adds on the loop-carried accumulators (no per-step reduction)
    acc_loss_ref[...] += jnp.where(mask, loss, 0.0)
    acc_cnt_ref[...] += jnp.where(mask & first_lane, 1.0, 0.0)

    @pl.when(j == nj - 1)
    def _finalize():
        loss_total = jnp.sum(acc_loss_ref[...])
        cnt_total = jnp.sum(acc_cnt_ref[...])
        loss_out_ref[...] = jnp.broadcast_to(loss_total, loss_out_ref.shape)
        cnt_out_ref[...] = jnp.broadcast_to(cnt_total, cnt_out_ref.shape)


def _none_kernel(x_ref, y_ref, out_ref, *, chunk):
    """reduction='none': per-row loss sum * per-row target sum."""
    x = x_ref[...].astype(jnp.float32)
    y = y_ref[...].astype(jnp.float32)
    rows, lanes = x.shape
    g_chunks = lanes // chunk

    loss = _bce_elementwise(x, y)
    if g_chunks == 1:
        row_loss = jnp.sum(loss, axis=-1, keepdims=True)
        row_ysum = jnp.sum(y, axis=-1, keepdims=True)
        vals = row_loss * row_ysum                       # (rows, 1)
    else:
        lane_ids = jax.lax.broadcasted_iota(jnp.int32, (rows, lanes), 1)
        col_ids = jax.lax.broadcasted_iota(jnp.int32, (rows, g_chunks), 1)
        vals = jnp.zeros((rows, g_chunks), jnp.float32)
        for g in range(g_chunks):
            sel = (lane_ids >= g * chunk) & (lane_ids < (g + 1) * chunk)
            row_loss = jnp.sum(jnp.where(sel, loss, 0.0), axis=-1, keepdims=True)
            row_ysum = jnp.sum(jnp.where(sel, y, 0.0), axis=-1, keepdims=True)
            vals = vals + jnp.where(col_ids == g, row_loss * row_ysum, 0.0)
    out_ref[...] = vals.astype(out_ref.dtype)


def bce_with_logits_loss_with_weights(inputs, targets, weight, reduction="mean",
                                      row_tile=None):
    """Pallas implementation of BCEWithLogitsLossWithWeights.forward."""
    n, c = inputs.shape
    assert targets.shape == (n, c) and weight.shape == (n, c)
    budget, vmem_limit = _vmem_caps()

    if reduction in ("mean", "sum"):
        (xs, ys, ws), rows, lanes, _ = _prepare_layout(
            [inputs, targets, weight], n, c)
        tr = row_tile or _pick_row_tile(rows, lanes, n_bufs=8,
                                        budget_bytes=budget)
        tr = min(tr, _round_down8(rows))
        nblocks = pl.cdiv(rows, tr)
        j_steps = pl.cdiv(nblocks, _NUM_CORES)

        def in_map(i, j):
            # Clamp so a core whose range runs past the last block re-reads a
            # valid block; those rows are discarded by the validity mask.
            return (jnp.minimum(i * j_steps + j, nblocks - 1), 0)

        in_spec = pl.BlockSpec((tr, lanes), in_map)
        out_map = lambda i, j: (i, 0, 0)
        kernel = functools.partial(_reduce_kernel, chunk=c, total_rows=rows)

        loss_p, cnt_p = pl.pallas_call(
            kernel,
            out_shape=[
                jax.ShapeDtypeStruct((_NUM_CORES, 8, 128), jnp.float32),
                jax.ShapeDtypeStruct((_NUM_CORES, 8, 128), jnp.float32),
            ],
            grid_spec=pltpu.PrefetchScalarGridSpec(
                num_scalar_prefetch=0,
                grid=(_NUM_CORES, j_steps),
                in_specs=[in_spec, in_spec, in_spec],
                out_specs=[pl.BlockSpec((1, 8, 128), out_map),
                           pl.BlockSpec((1, 8, 128), out_map)],
                scratch_shapes=[pltpu.VMEM((tr, lanes), jnp.float32),
                                pltpu.VMEM((tr, lanes), jnp.float32)],
            ),
            compiler_params=pltpu.CompilerParams(
                dimension_semantics=("parallel", "arbitrary"),
                vmem_limit_bytes=vmem_limit),
        )(xs, ys, ws)

        total = jnp.sum(loss_p[:, 0, 0])          # one partial per TensorCore
        if reduction == "sum":
            return total
        count = jnp.sum(cnt_p[:, 0, 0])
        return total / count                      # NaN if no row survives (== torch)

    # reduction == 'none'
    (xs, ys), rows, lanes, g = _prepare_layout([inputs, targets], n, c)
    tr = row_tile or _pick_row_tile(rows, lanes, n_bufs=6, budget_bytes=budget)
    tr = min(tr, _round_down8(rows))
    in_spec = pl.BlockSpec((tr, lanes), lambda i: (i, 0))
    out = pl.pallas_call(
        functools.partial(_none_kernel, chunk=c),
        out_shape=jax.ShapeDtypeStruct((rows, g), inputs.dtype),
        grid_spec=pltpu.PrefetchScalarGridSpec(
            num_scalar_prefetch=0,
            grid=(pl.cdiv(rows, tr),),
            in_specs=[in_spec, in_spec],
            out_specs=pl.BlockSpec((tr, g), lambda i: (i, 0)),
        ),
        compiler_params=pltpu.CompilerParams(
            dimension_semantics=("parallel",),
            vmem_limit_bytes=vmem_limit),
    )(xs, ys)
    return out.reshape(-1)[:n]


def _reference(inputs, targets, weight, reduction):
    loss = _bce_elementwise(inputs.astype(jnp.float32),
                            targets.astype(jnp.float32)).sum(axis=1)
    if reduction == "none":
        return loss * targets.sum(axis=1)
    m = weight.sum(axis=1) != 0
    masked = jnp.sum(jnp.where(m, loss, 0.0))
    if reduction == "sum":
        return masked
    return masked / jnp.sum(m)


if __name__ == "__main__":
    key = jax.random.PRNGKey(0)
    ok = True
    # (128, 32): lane-packed fast path.   (37, 48): generic path + partial block.
    # (257, 64) with row_tile=16: multi-block grid + per-core clamping path.
    cases = (((128, 32), None), ((37, 48), None), ((257, 64), 16))
    for (n, c), rt in cases:
        key, k1, k2, k3 = jax.random.split(key, 4)
        inputs = jax.random.normal(k1, (n, c), dtype=jnp.float32)
        targets = jax.random.bernoulli(k2, 0.5, (n, c)).astype(jnp.float32)
        weight = jax.random.bernoulli(k3, 0.7, (n, c)).astype(jnp.float32)
        weight = weight.at[::5].set(0.0)   # some rows fully masked out

        for red in ("mean", "sum", "none"):
            got = jax.block_until_ready(
                bce_with_logits_loss_with_weights(inputs, targets, weight, red,
                                                  row_tile=rt))
            ref = _reference(inputs, targets, weight, red)
            if not jnp.allclose(got, ref, rtol=1e-4, atol=1e-4):
                ok = False
                print(f"MISMATCH N={n} C={c} reduction={red}: {got} vs {ref}")

    if ok:
        print("KERNEL_OK")
</pallas_src>

<mosaic_0001>
module attributes {stable_mosaic.version = 11 : i64} {
  func.func @_reduce_kernel(%arg0: i32, %arg1: i32, %arg2: memref<32x128xf32, #tpu.memory_space<vmem>>, %arg3: memref<32x128xf32, #tpu.memory_space<vmem>>, %arg4: memref<32x128xf32, #tpu.memory_space<vmem>>, %arg5: memref<1x8x128xf32, #tpu.memory_space<vmem>>, %arg6: memref<1x8x128xf32, #tpu.memory_space<vmem>>, %arg7: memref<32x128xf32, #tpu.memory_space<vmem>>, %arg8: memref<32x128xf32, #tpu.memory_space<vmem>>) attributes {dimension_semantics = [#tpu.dimension_semantics<parallel>, #tpu.dimension_semantics<arbitrary>], iteration_bounds = array<i64: 2, 1>, scalar_prefetch = 0 : i64, scratch_operands = 2 : i64, tpu.core_type = #tpu.core_type<tc>, window_params = [{transform_indices = @transform_0, window_bounds = array<i64: 32, 128>}, {transform_indices = @transform_1, window_bounds = array<i64: 32, 128>}, {transform_indices = @transform_2, window_bounds = array<i64: 32, 128>}, {transform_indices = @transform_3, window_bounds = array<i64: 1, 8, 128>}, {transform_indices = @transform_4, window_bounds = array<i64: 1, 8, 128>}]} {
    %c0_i32 = arith.constant 0 : i32
    %0 = arith.cmpi eq, %arg1, %c0_i32 : i32
    %1 = arith.extui %0 : i1 to i32
    %c0_i32_0 = arith.constant 0 : i32
    %2 = arith.cmpi ne, %1, %c0_i32_0 : i32
    scf.if %2 {
      %cst_42 = arith.constant 0.000000e+00 : f32
      %106 = vector.broadcast %cst_42 : f32 to vector<32x128xf32>
      %c0_43 = arith.constant 0 : index
      %c0_44 = arith.constant 0 : index
      %107 = vector.load %arg7[%c0_43, %c0_44] : memref<32x128xf32, #tpu.memory_space<vmem>>, vector<32x128xf32>
      tpu.vector_store %arg7[%c0_43, %c0_44], %106 {strides = array<i32>} : memref<32x128xf32, #tpu.memory_space<vmem>>, vector<32x128xf32>,
      %cst_45 = arith.constant 0.000000e+00 : f32
      %108 = vector.broadcast %cst_45 : f32 to vector<32x128xf32>
      %c0_46 = arith.constant 0 : index
      %c0_47 = arith.constant 0 : index
      %109 = vector.load %arg8[%c0_46, %c0_47] : memref<32x128xf32, #tpu.memory_space<vmem>>, vector<32x128xf32>
      tpu.vector_store %arg8[%c0_46, %c0_47], %108 {strides = array<i32>} : memref<32x128xf32, #tpu.memory_space<vmem>>, vector<32x128xf32>,
    } else {
    }
    %c0 = arith.constant 0 : index
    %c0_1 = arith.constant 0 : index
    %3 = vector.load %arg2[%c0, %c0_1] : memref<32x128xf32, #tpu.memory_space<vmem>>, vector<32x128xf32>
    %c0_2 = arith.constant 0 : index
    %c0_3 = arith.constant 0 : index
    %4 = vector.load %arg3[%c0_2, %c0_3] : memref<32x128xf32, #tpu.memory_space<vmem>>, vector<32x128xf32>
    %c0_4 = arith.constant 0 : index
    %c0_5 = arith.constant 0 : index
    %5 = vector.load %arg4[%c0_4, %c0_5] : memref<32x128xf32, #tpu.memory_space<vmem>>, vector<32x128xf32>
    %cst = arith.constant 0.000000e+00 : f32
    %6 = vector.broadcast %cst : f32 to vector<32x128xf32>
    %7 = arith.maximumf %3, %6 : vector<32x128xf32>
    %8 = arith.mulf %3, %4 : vector<32x128xf32>
    %9 = arith.subf %7, %8 : vector<32x128xf32>
    %10 = math.absf %3 : vector<32x128xf32>
    %cst_6 = arith.constant 0.000000e+00 : f32
    %11 = vector.broadcast %cst_6 : f32 to vector<32x128xf32>
    %12 = arith.subf %11, %10 : vector<32x128xf32>
    %13 = math.exp %12 : vector<32x128xf32>
    %cst_7 = arith.constant 1.000000e+00 : f32
    %14 = vector.broadcast %cst_7 : f32 to vector<32x128xf32>
    %15 = arith.addf %14, %13 : vector<32x128xf32>
    %16 = math.log %15 : vector<32x128xf32>
    %17 = arith.addf %9, %16 : vector<32x128xf32>
    %18 = tpu.iota {dimensions = array<i32: 1>} : vector<32x128xi32>
    %cst_8 = arith.constant 0.000000e+00 : f32
    %19 = vector.broadcast %cst_8 : f32 to vector<32x128xf32>
    %c0_i32_9 = arith.constant 0 : i32
    %20 = vector.broadcast %c0_i32_9 : i32 to vector<32x128xi32>
    %21 = arith.cmpi sge, %18, %20 : vector<32x128xi32>
    %c32_i32 = arith.constant 32 : i32
    %22 = vector.broadcast %c32_i32 : i32 to vector<32x128xi32>
    %23 = arith.cmpi slt, %18, %22 : vector<32x128xi32>
    %24 = arith.andi %21, %23 : vector<32x128xi1>
    %cst_10 = arith.constant 0.000000e+00 : f32
    %25 = vector.broadcast %cst_10 : f32 to vector<32x128xf32>
    %26 = arith.select %24, %5, %25 : vector<32x128xi1>, vector<32x128xf32>
    %cst_11 = arith.constant dense<0.000000e+00> : vector<32xf32>
    %27 = vector.multi_reduction <add>, %26, %cst_11 [1] : vector<32x128xf32> to vector<32xf32>
    %28 = vector.shape_cast %27 : vector<32xf32> to vector<32x1xf32>
    %cst_12 = arith.constant 0.000000e+00 : f32
    %29 = vector.shape_cast %28 : vector<32x1xf32> to vector<32x1xf32>
    %30 = vector.broadcast %29 : vector<32x1xf32> to vector<32x128xf32>
    %31 = vector.broadcast %cst_12 : f32 to vector<32x128xf32>
    %32 = arith.select %24, %30, %31 : vector<32x128xi1>, vector<32x128xf32>
    %33 = arith.addf %19, %32 : vector<32x128xf32>
    %c32_i32_13 = arith.constant 32 : i32
    %34 = vector.broadcast %c32_i32_13 : i32 to vector<32x128xi32>
    %35 = arith.cmpi sge, %18, %34 : vector<32x128xi32>
    %c64_i32 = arith.constant 64 : i32
    %36 = vector.broadcast %c64_i32 : i32 to vector<32x128xi32>
    %37 = arith.cmpi slt, %18, %36 : vector<32x128xi32>
    %38 = arith.andi %35, %37 : vector<32x128xi1>
    %cst_14 = arith.constant 0.000000e+00 : f32
    %39 = vector.broadcast %cst_14 : f32 to vector<32x128xf32>
    %40 = arith.select %38, %5, %39 : vector<32x128xi1>, vector<32x128xf32>
    %cst_15 = arith.constant dense<0.000000e+00> : vector<32xf32>
    %41 = vector.multi_reduction <add>, %40, %cst_15 [1] : vector<32x128xf32> to vector<32xf32>
    %42 = vector.shape_cast %41 : vector<32xf32> to vector<32x1xf32>
    %cst_16 = arith.constant 0.000000e+00 : f32
    %43 = vector.shape_cast %42 : vector<32x1xf32> to vector<32x1xf32>
    %44 = vector.broadcast %43 : vector<32x1xf32> to vector<32x128xf32>
    %45 = vector.broadcast %cst_16 : f32 to vector<32x128xf32>
    %46 = arith.select %38, %44, %45 : vector<32x128xi1>, vector<32x128xf32>
    %47 = arith.addf %33, %46 : vector<32x128xf32>
    %c64_i32_17 = arith.constant 64 : i32
    %48 = vector.broadcast %c64_i32_17 : i32 to vector<32x128xi32>
    %49 = arith.cmpi sge, %18, %48 : vector<32x128xi32>
    %c96_i32 = arith.constant 96 : i32
    %50 = vector.broadcast %c96_i32 : i32 to vector<32x128xi32>
    %51 = arith.cmpi slt, %18, %50 : vector<32x128xi32>
    %52 = arith.andi %49, %51 : vector<32x128xi1>
    %cst_18 = arith.constant 0.000000e+00 : f32
    %53 = vector.broadcast %cst_18 : f32 to vector<32x128xf32>
    %54 = arith.select %52, %5, %53 : vector<32x128xi1>, vector<32x128xf32>
    %cst_19 = arith.constant dense<0.000000e+00> : vector<32xf32>
    %55 = vector.multi_reduction <add>, %54, %cst_19 [1] : vector<32x128xf32> to vector<32xf32>
    %56 = vector.shape_cast %55 : vector<32xf32> to vector<32x1xf32>
    %cst_20 = arith.constant 0.000000e+00 : f32
    %57 = vector.shape_cast %56 : vector<32x1xf32> to vector<32x1xf32>
    %58 = vector.broadcast %57 : vector<32x1xf32> to vector<32x128xf32>
    %59 = vector.broadcast %cst_20 : f32 to vector<32x128xf32>
    %60 = arith.select %52, %58, %59 : vector<32x128xi1>, vector<32x128xf32>
    %61 = arith.addf %47, %60 : vector<32x128xf32>
    %c96_i32_21 = arith.constant 96 : i32
    %62 = vector.broadcast %c96_i32_21 : i32 to vector<32x128xi32>
    %63 = arith.cmpi sge, %18, %62 : vector<32x128xi32>
    %c128_i32 = arith.constant 128 : i32
    %64 = vector.broadcast %c128_i32 : i32 to vector<32x128xi32>
    %65 = arith.cmpi slt, %18, %64 : vector<32x128xi32>
    %66 = arith.andi %63, %65 : vector<32x128xi1>
    %cst_22 = arith.constant 0.000000e+00 : f32
    %67 = vector.broadcast %cst_22 : f32 to vector<32x128xf32>
    %68 = arith.select %66, %5, %67 : vector<32x128xi1>, vector<32x128xf32>
    %cst_23 = arith.constant dense<0.000000e+00> : vector<32xf32>
    %69 = vector.multi_reduction <add>, %68, %cst_23 [1] : vector<32x128xf32> to vector<32xf32>
    %70 = vector.shape_cast %69 : vector<32xf32> to vector<32x1xf32>
    %cst_24 = arith.constant 0.000000e+00 : f32
    %71 = vector.shape_cast %70 : vector<32x1xf32> to vector<32x1xf32>
    %72 = vector.broadcast %71 : vector<32x1xf32> to vector<32x128xf32>
    %73 = vector.broadcast %cst_24 : f32 to vector<32x128xf32>
    %74 = arith.select %66, %72, %73 : vector<32x128xi1>, vector<32x128xf32>
    %75 = arith.addf %61, %74 : vector<32x128xf32>
    %c31_i32 = arith.constant 31 : i32
    %76 = vector.broadcast %c31_i32 : i32 to vector<32x128xi32>
    %77 = arith.andi %18, %76 : vector<32x128xi32>
    %c0_i32_25 = arith.constant 0 : i32
    %78 = vector.broadcast %c0_i32_25 : i32 to vector<32x128xi32>
    %79 = arith.cmpi eq, %77, %78 : vector<32x128xi32>
    %c1_i32 = arith.constant 1 : i32
    %80 = arith.muli %arg0, %c1_i32 : i32
    %81 = arith.addi %80, %arg1 : i32
    %c32_i32_26 = arith.constant 32 : i32
    %82 = arith.muli %81, %c32_i32_26 : i32
    %83 = tpu.iota {dimensions = array<i32: 0>} : vector<32x128xi32>
    %84 = vector.broadcast %82 : i32 to vector<32x128xi32>
    %85 = arith.addi %84, %83 : vector<32x128xi32>
    %c32_i32_27 = arith.constant 32 : i32
    %86 = vector.broadcast %c32_i32_27 : i32 to vector<32x128xi32>
    %87 = arith.cmpi slt, %85, %86 : vector<32x128xi32>
    %cst_28 = arith.constant 0.000000e+00 : f32
    %88 = vector.broadcast %cst_28 : f32 to vector<32x128xf32>
    %89 = arith.cmpf one, %75, %88 : vector<32x128xf32>
    %90 = arith.andi %89, %87 : vector<32x128xi1>
    %c0_29 = arith.constant 0 : index
    %c0_30 = arith.constant 0 : index
    %91 = vector.load %arg7[%c0_29, %c0_30] : memref<32x128xf32, #tpu.memory_space<vmem>>, vector<32x128xf32>
    %cst_31 = arith.constant 0.000000e+00 : f32
    %92 = vector.broadcast %cst_31 : f32 to vector<32x128xf32>
    %93 = arith.select %90, %17, %92 : vector<32x128xi1>, vector<32x128xf32>
    %94 = arith.addf %91, %93 : vector<32x128xf32>
    %c0_32 = arith.constant 0 : index
    %c0_33 = arith.constant 0 : index
    %95 = vector.load %arg7[%c0_32, %c0_33] : memref<32x128xf32, #tpu.memory_space<vmem>>, vector<32x128xf32>
    tpu.vector_store %arg7[%c0_32, %c0_33], %94 {strides = array<i32>} : memref<32x128xf32, #tpu.memory_space<vmem>>, vector<32x128xf32>,
    %c0_34 = arith.constant 0 : index
    %c0_35 = arith.constant 0 : index
    %96 = vector.load %arg8[%c0_34, %c0_35] : memref<32x128xf32, #tpu.memory_space<vmem>>, vector<32x128xf32>
    %97 = arith.andi %90, %79 : vector<32x128xi1>
    %cst_36 = arith.constant 1.000000e+00 : f32
    %cst_37 = arith.constant 0.000000e+00 : f32
    %98 = vector.broadcast %cst_36 : f32 to vector<32x128xf32>
    %99 = vector.broadcast %cst_37 : f32 to vector<32x128xf32>
    %100 = arith.select %97, %98, %99 : vector<32x128xi1>, vector<32x128xf32>
    %101 = arith.addf %96, %100 : vector<32x128xf32>
    %c0_38 = arith.constant 0 : index
    %c0_39 = arith.constant 0 : index
    %102 = vector.load %arg8[%c0_38, %c0_39] : memref<32x128xf32, #tpu.memory_space<vmem>>, vector<32x128xf32>
    tpu.vector_store %arg8[%c0_38, %c0_39], %101 {strides = array<i32>} : memref<32x128xf32, #tpu.memory_space<vmem>>, vector<32x128xf32>,
    %c0_i32_40 = arith.constant 0 : i32
    %103 = arith.cmpi eq, %arg1, %c0_i32_40 : i32
    %104 = arith.extui %103 : i1 to i32
    %c0_i32_41 = arith.constant 0 : i32
    %105 = arith.cmpi ne, %104, %c0_i32_41 : i32
    scf.if %105 {
      %c0_42 = arith.constant 0 : index
      %c0_43 = arith.constant 0 : index
      %106 = vector.load %arg7[%c0_42, %c0_43] : memref<32x128xf32, #tpu.memory_space<vmem>>, vector<32x128xf32>
      %107 = vector.shape_cast %106 : vector<32x128xf32> to vector<1x32x128xf32>
      %cst_44 = arith.constant dense<0.000000e+00> : vector<1xf32>
      %108 = vector.multi_reduction <add>, %107, %cst_44 [1, 2] : vector<1x32x128xf32> to vector<1xf32>
      %109 = vector.shape_cast %108 : vector<1xf32> to vector<1x1x1xf32>
      %110 = vector.extract %109[0, 0, 0] : f32 from vector<1x1x1xf32>
      %c0_45 = arith.constant 0 : index
      %c0_46 = arith.constant 0 : index
      %111 = vector.load %arg8[%c0_45, %c0_46] : memref<32x128xf32, #tpu.memory_space<vmem>>, vector<32x128xf32>
      %112 = vector.shape_cast %111 : vector<32x128xf32> to vector<1x32x128xf32>
      %cst_47 = arith.constant dense<0.000000e+00> : vector<1xf32>
      %113 = vector.multi_reduction <add>, %112, %cst_47 [1, 2] : vector<1x32x128xf32> to vector<1xf32>
      %114 = vector.shape_cast %113 : vector<1xf32> to vector<1x1x1xf32>
      %115 = vector.extract %114[0, 0, 0] : f32 from vector<1x1x1xf32>
      %116 = vector.broadcast %110 : f32 to vector<1x8x128xf32>
      %c0_48 = arith.constant 0 : index
      %c0_49 = arith.constant 0 : index
      %c0_50 = arith.constant 0 : index
      %117 = vector.load %arg5[%c0_48, %c0_49, %c0_50] : memref<1x8x128xf32, #tpu.memory_space<vmem>>, vector<1x8x128xf32>
      tpu.vector_store %arg5[%c0_48, %c0_49, %c0_50], %116 {strides = array<i32>} : memref<1x8x128xf32, #tpu.memory_space<vmem>>, vector<1x8x128xf32>,
      %118 = vector.broadcast %115 : f32 to vector<1x8x128xf32>
      %c0_51 = arith.constant 0 : index
      %c0_52 = arith.constant 0 : index
      %c0_53 = arith.constant 0 : index
      %119 = vector.load %arg6[%c0_51, %c0_52, %c0_53] : memref<1x8x128xf32, #tpu.memory_space<vmem>>, vector<1x8x128xf32>
      tpu.vector_store %arg6[%c0_51, %c0_52, %c0_53], %118 {strides = array<i32>} : memref<1x8x128xf32, #tpu.memory_space<vmem>>, vector<1x8x128xf32>,
    } else {
    }
    return
  }
  func.func @transform_0(%arg0: i32, %arg1: i32) -> (i32, i32) {
    %c1_i32 = arith.constant 1 : i32
    %0 = arith.muli %arg0, %c1_i32 : i32
    %1 = arith.addi %0, %arg1 : i32
    %c0_i32 = arith.constant 0 : i32
    %2 = arith.minsi %1, %c0_i32 : i32
    %c0_i32_0 = arith.constant 0 : i32
    %c0_i32_1 = arith.constant 0 : i32
    return %2, %c0_i32_0 : i32, i32
  }
  func.func @transform_1(%arg0: i32, %arg1: i32) -> (i32, i32) {
    %c1_i32 = arith.constant 1 : i32
    %0 = arith.muli %arg0, %c1_i32 : i32
    %1 = arith.addi %0, %arg1 : i32
    %c0_i32 = arith.constant 0 : i32
    %2 = arith.minsi %1, %c0_i32 : i32
    %c0_i32_0 = arith.constant 0 : i32
    %c0_i32_1 = arith.constant 0 : i32
    return %2, %c0_i32_0 : i32, i32
  }
  func.func @transform_2(%arg0: i32, %arg1: i32) -> (i32, i32) {
    %c1_i32 = arith.constant 1 : i32
    %0 = arith.muli %arg0, %c1_i32 : i32
    %1 = arith.addi %0, %arg1 : i32
    %c0_i32 = arith.constant 0 : i32
    %2 = arith.minsi %1, %c0_i32 : i32
    %c0_i32_0 = arith.constant 0 : i32
    %c0_i32_1 = arith.constant 0 : i32
    return %2, %c0_i32_0 : i32, i32
  }
  func.func @transform_3(%arg0: i32, %arg1: i32) -> (i32, i32, i32) {
    %c0_i32 = arith.constant 0 : i32
    %c0_i32_0 = arith.constant 0 : i32
    %c0_i32_1 = arith.constant 0 : i32
    return %arg0, %c0_i32, %c0_i32_0 : i32, i32, i32
  }
  func.func @transform_4(%arg0: i32, %arg1: i32) -> (i32, i32, i32) {
    %c0_i32 = arith.constant 0 : i32
    %c0_i32_0 = arith.constant 0 : i32
    %c0_i32_1 = arith.constant 0 : i32
    return %arg0, %c0_i32, %c0_i32_0 : i32, i32, i32
  }
}

</mosaic_0001>

<llo_original>
// kernel: tpu_custom_call.1
$region0: #{tpu_custom_call.1}
  #allocation0 [shape = 'u32[]', space=smem, size = 0x4, offset = 0x4, fixed_abs, tag = 'smem constant byte address 0x4 - core index']
  #allocation1 [shape = 'u32[72,128]{1,0:T(1,128)}', space=vmem, size = 0x9000, scoped, tag = 'internal scratch']
  #allocation2 [shape = 'f32[32,128]{1,0:T(8,128)}', space=vmem, size = 0x4000, scoped, tag = 'scratch operand']
  #allocation3 [shape = 'f32[32,128]{1,0:T(8,128)}', space=vmem, size = 0x4000, scoped, tag = 'scratch operand']
  %s0 = inlined_call_operand.hbm [shape: f32[32,128], index: 0, kind: input, shape index: {}]
  %s1 = inlined_call_operand.hbm [shape: f32[32,128], index: 1, kind: input, shape index: {}]
  %s2 = inlined_call_operand.hbm [shape: f32[32,128], index: 2, kind: input, shape index: {}]
  %s3 = inlined_call_operand.hbm [shape: f32[2,8,128], index: 3, kind: output, shape index: {0}]
  %s4 = inlined_call_operand.hbm [shape: f32[2,8,128], index: 4, kind: output, shape index: {1}]
  %5 = xla_tuple %s3, %s4
  %s6 = sld [smem:[#allocation0]]
  $region73: #{tpu_custom_call.1} parent=0
    _
  %s8 = ssub.s32 1, %s6
  %s9 = scalar_select 0, %s8, %s6
  $region1: #{tpu_custom_call.1} parent=0
    #allocation4 [shape = 'u8[32768]{0}', space=vmem, size = 0x8000, scoped, tag = 'input window, operand 0']
    #allocation5 [shape = 's32[2]{0}', space=sflag, size = 0x8, scoped, tag = 'scoped memory for tpu_custom_call.1']
    #allocation6 [shape = 's32[2]{0}', space=sflag, size = 0x8, scoped, tag = 'scoped memory for tpu_custom_call.1']
    #allocation7 [shape = 'u8[32768]{0}', space=vmem, size = 0x8000, scoped, tag = 'input window, operand 1']
    #allocation8 [shape = 's32[2]{0}', space=sflag, size = 0x8, scoped, tag = 'scoped memory for tpu_custom_call.1']
    #allocation9 [shape = 'u8[32768]{0}', space=vmem, size = 0x8000, scoped, tag = 'input window, operand 2']
    #allocation10 [shape = 'u8[8192]{0}', space=vmem, size = 0x2000, scoped, tag = 'output window, operand 0']
    #allocation11 [shape = 'u8[8192]{0}', space=vmem, size = 0x2000, scoped, tag = 'output window, operand 1']
    #allocation12 [shape = 's32[2]{0}', space=sflag, size = 0x8, scoped, tag = 'scoped memory for tpu_custom_call.1']
    %10 = vsyncpa [#allocation5], 0
    %s11 = scalar_lea.sflag [#allocation5], 1
    %12 = vsyncpa %s11, 0
    %13 = vsyncpa [#allocation8], 0
    %s14 = scalar_lea.sflag [#allocation8], 1
    %15 = vsyncpa %s14, 0
    %16 = vsyncpa [#allocation6], 0
    %s17 = scalar_lea.sflag [#allocation6], 1
    %18 = vsyncpa %s17, 0
    %19 = vsyncpa [#allocation12], 0
    %s20 = scalar_lea.sflag [#allocation12], 1
    %21 = vsyncpa %s20, 0
    loop: start=0, step=1, limit=4
    $region2: #{tpu_custom_call.1} parent=1 // loop_pre_header
      _
    $region3: #{tpu_custom_call.1} parent=1 // loop_header
      %s23 = sphi 0, %s27
      %p24 = scmp.ge.s32.totalorder %s23, 4
      %s30 = sphi 0, %s42
      %s31 = sphi 0, %s38
      %s32 = sphi 0, %s30
      %s33 = sphi 0, %s31
      %s34 = sphi 0, %s32
      %s35 = sphi 0, %s33
      %s51 = sphi 0, %s53
      %s54 = sphi 0, %s51
      %s55 = sphi 0, %s54
      %s71 = sphi 0, %s55
      %s83 = sphi 0, %s85
      %s86 = sphi 0, %s83
      %s87 = sphi 0, %s86
      %s103 = sphi 0, %s87
      %s115 = sphi 0, %s117
      %s118 = sphi 0, %s115
      %s119 = sphi 0, %s118
      %s135 = sphi 0, %s119
      %s141 = sphi 0, %s143
      %s144 = sphi 0, %s141
      %s145 = sphi 0, %s144
      %s161 = sphi 0, %s145
      %s167 = sphi 0, %s169
      %s170 = sphi 0, %s167
      %s171 = sphi 0, %s170
      %s187 = sphi 0, %s171
    $region4: #{tpu_custom_call.1} parent=1 // loop_header_branch
      %26 = sbr.rel (%p24) target = $region8
    $region5: #{tpu_custom_call.1} parent=1 // loop_body
      %s28 = ssub.s32 %s23, 1
      %s29 = ssub.s32 %s23, 2
      %s36 = sadd.s32 1, %s31
      %p37 = scmp.ge.s32.totalorder %s36, 1
      %s38 = scalar_select %p37, 0, %s36
      %s39 = sadd.s32 1, %s30
      %s40 = scalar_select %p37, %s39, %s30
      %p41 = scmp.ge.s32.totalorder %s40, 2
      %s42 = scalar_select %p41, 0, %s40
      %s43 = sadd.s32 %s30, %s31
      %p44 = scmp.lt.s32.totalorder %s43, 0
      %s45 = scalar_select %p44, %s43, 0
      %s46 = sadd.s32 %s42, %s38
      %p47 = scmp.lt.s32.totalorder %s46, 0
      %s48 = scalar_select %p47, %s46, 0
      %s49 = ssub.s32 %s45, %s48
      %p50 = scmp.eq.s32.totalorder %s49, 0
      %s52 = sadd.s32 %s51, 1
      %s53 = scalar_select %p50, %s51, %s52
      %p56 = pneg %p50
      %p57 = scmp.eq.s32.totalorder %s23, 1
      %p58 = por %p56, %p57
      %p59 = scmp.ne.s32.totalorder %s51, %s54
      %p60 = scmp.eq.s32.totalorder %s23, 0
      %p61 = por %p59, %p60
      %p62 = scmp.ne.s32.totalorder %s51, %s54
      %p63 = scmp.eq.s32.totalorder %s28, 1
      %p64 = por %p62, %p63
      %p65 = scmp.ne.s32.totalorder %s54, %s55
      %p66 = scmp.eq.s32.totalorder %s28, 0
      %p67 = por %p65, %p66
      %p68 = scmp.ne.s32.totalorder %s54, %s55
      %p69 = scmp.eq.s32.totalorder %s29, 1
      %p70 = por %p68, %p69
      %p72 = scmp.ne.s32.totalorder %s55, %s71
      %p73 = scmp.eq.s32.totalorder %s29, 0
      %p74 = por %p72, %p73
      %s75 = sadd.s32 %s30, %s31
      %p76 = scmp.lt.s32.totalorder %s75, 0
      %s77 = scalar_select %p76, %s75, 0
      %s78 = sadd.s32 %s42, %s38
      %p79 = scmp.lt.s32.totalorder %s78, 0
      %s80 = scalar_select %p79, %s78, 0
      %s81 = ssub.s32 %s77, %s80
      %p82 = scmp.eq.s32.totalorder %s81, 0
      %s84 = sadd.s32 %s83, 1
      %s85 = scalar_select %p82, %s83, %s84
      %p88 = pneg %p82
      %p89 = scmp.eq.s32.totalorder %s23, 1
      %p90 = por %p88, %p89
      %p91 = scmp.ne.s32.totalorder %s83, %s86
      %p92 = scmp.eq.s32.totalorder %s23, 0
      %p93 = por %p91, %p92
      %p94 = scmp.ne.s32.totalorder %s83, %s86
      %p95 = scmp.eq.s32.totalorder %s28, 1
      %p96 = por %p94, %p95
      %p97 = scmp.ne.s32.totalorder %s86, %s87
      %p98 = scmp.eq.s32.totalorder %s28, 0
      %p99 = por %p97, %p98
      %p100 = scmp.ne.s32.totalorder %s86, %s87
      %p101 = scmp.eq.s32.totalorder %s29, 1
      %p102 = por %p100, %p101
      %p104 = scmp.ne.s32.totalorder %s87, %s103
      %p105 = scmp.eq.s32.totalorder %s29, 0
      %p106 = por %p104, %p105
      %s107 = sadd.s32 %s30, %s31
      %p108 = scmp.lt.s32.totalorder %s107, 0
      %s109 = scalar_select %p108, %s107, 0
      %s110 = sadd.s32 %s42, %s38
      %p111 = scmp.lt.s32.totalorder %s110, 0
      %s112 = scalar_select %p111, %s110, 0
      %s113 = ssub.s32 %s109, %s112
      %p114 = scmp.eq.s32.totalorder %s113, 0
      %s116 = sadd.s32 %s115, 1
      %s117 = scalar_select %p114, %s115, %s116
      %p120 = pneg %p114
      %p121 = scmp.eq.s32.totalorder %s23, 1
      %p122 = por %p120, %p121
      %p123 = scmp.ne.s32.totalorder %s115, %s118
      %p124 = scmp.eq.s32.totalorder %s23, 0
      %p125 = por %p123, %p124
      %p126 = scmp.ne.s32.totalorder %s115, %s118
      %p127 = scmp.eq.s32.totalorder %s28, 1
      %p128 = por %p126, %p127
      %p129 = scmp.ne.s32.totalorder %s118, %s119
      %p130 = scmp.eq.s32.totalorder %s28, 0
      %p131 = por %p129, %p130
      %p132 = scmp.ne.s32.totalorder %s118, %s119
      %p133 = scmp.eq.s32.totalorder %s29, 1
      %p134 = por %p132, %p133
      %p136 = scmp.ne.s32.totalorder %s119, %s135
      %p137 = scmp.eq.s32.totalorder %s29, 0
      %p138 = por %p136, %p137
      %s139 = ssub.s32 %s30, %s42
      %p140 = scmp.eq.s32.totalorder %s139, 0
      %s142 = sadd.s32 %s141, 1
      %s143 = scalar_select %p140, %s141, %s142
      %p146 = pneg %p140
      %p147 = scmp.eq.s32.totalorder %s23, 1
      %p148 = por %p146, %p147
      %p149 = scmp.ne.s32.totalorder %s141, %s144
      %p150 = scmp.eq.s32.totalorder %s23, 0
      %p151 = por %p149, %p150
      %p152 = scmp.ne.s32.totalorder %s141, %s144
      %p153 = scmp.eq.s32.totalorder %s28, 1
      %p154 = por %p152, %p153
      %p155 = scmp.ne.s32.totalorder %s144, %s145
      %p156 = scmp.eq.s32.totalorder %s28, 0
      %p157 = por %p155, %p156
      %p158 = scmp.ne.s32.totalorder %s144, %s145
      %p159 = scmp.eq.s32.totalorder %s29, 1
      %p160 = por %p158, %p159
      %p162 = scmp.ne.s32.totalorder %s145, %s161
      %p163 = scmp.eq.s32.totalorder %s29, 0
      %p164 = por %p162, %p163
      %s165 = ssub.s32 %s30, %s42
      %p166 = scmp.eq.s32.totalorder %s165, 0
      %s168 = sadd.s32 %s167, 1
      %s169 = scalar_select %p166, %s167, %s168
      %p172 = pneg %p166
      %p173 = scmp.eq.s32.totalorder %s23, 1
      %p174 = por %p172, %p173
      %p175 = scmp.ne.s32.totalorder %s167, %s170
      %p176 = scmp.eq.s32.totalorder %s23, 0
      %p177 = por %p175, %p176
      %p178 = scmp.ne.s32.totalorder %s167, %s170
      %p179 = scmp.eq.s32.totalorder %s28, 1
      %p180 = por %p178, %p179
      %p181 = scmp.ne.s32.totalorder %s170, %s171
      %p182 = scmp.eq.s32.totalorder %s28, 0
      %p183 = por %p181, %p182
      %p184 = scmp.ne.s32.totalorder %s170, %s171
      %p185 = scmp.eq.s32.totalorder %s29, 1
      %p186 = por %p184, %p185
      %p188 = scmp.ne.s32.totalorder %s171, %s187
      %p189 = scmp.eq.s32.totalorder %s29, 0
      %p190 = por %p188, %p189
      %p191 = scmp.le.s32.totalorder 1, %s23
      %p192 = scmp.lt.s32.totalorder %s23, 3
      %p193 = pnand %p191, %p192
      %p194 = pneg %p193
      // Predicated region
      $region9: #{tpu_custom_call.1} parent=5 // pred_check
        _
      $region10: #{tpu_custom_call.1} parent=5 // pred_check_branch
        %196 = sbr.rel (%p193) target = $region12
      $region11: #{tpu_custom_call.1} parent=5 // pred_region
        %s197 = ssub.s32 %s23, 1
      $region12: #{tpu_custom_call.1} parent=5 // pred_fallthru
        _
      %p198 = scmp.lt.s32.totalorder %s23, 2
      // Predicated region
      $region13: #{tpu_custom_call.1} parent=5 // pred_check
        %p199 = pneg %p198
      $region14: #{tpu_custom_call.1} parent=5 // pred_check_branch
        %201 = sbr.rel (%p199) target = $region16
      $region15: #{tpu_custom_call.1} parent=5 // pred_region
        // Predicated region
        $region17: #{tpu_custom_call.1} parent=15 // pred_check
          %p202 = pneg %p61
        $region18: #{tpu_custom_call.1} parent=15 // pred_check_branch
          %204 = sbr.rel (%p202) target = $region20
        $region19: #{tpu_custom_call.1} parent=15 // pred_region
          %s205 = sand.u32 %s51, 1
          %s206 = scalar_lea.sflag [#allocation5], %s205
          %s207 = sand.u32 %s51, 1
          %s208 = smul.addr %s207, 32
          %s209 = scalar_lea.vmem [#allocation4], %s208
          %s210 = sadd.s32 %s30, %s31
          %p211 = scmp.lt.s32.totalorder %s210, 0
          %s212 = scalar_select %p211, %s210, 0
          %s213 = smul.u32 4, %s212
          %215 = vsyncadd %s206, 0
          %s216 = smul.addr %s213, 8
          %s217 = scalar_lea.hbm %s0, %s216
          %s218 = sshll.u32 %s217, 4
          %s219 = int_to_ptr.hbm [resolvable:$true] %s218
          %s220 = sshll.u32 %s209, 4
          %s221 = int_to_ptr.vmem [resolvable:$true] %s220
          %226 = dma.hbm_to_vmem [thread:$0]  %s219, 512, %s221, %s206, 128, 128, 8
        $region20: #{tpu_custom_call.1} parent=15 // pred_fallthru
          _
        // Predicated region
        $region21: #{tpu_custom_call.1} parent=15 // pred_check
          %p227 = pneg %p93
        $region22: #{tpu_custom_call.1} parent=15 // pred_check_branch
          %229 = sbr.rel (%p227) target = $region24
        $region23: #{tpu_custom_call.1} parent=15 // pred_region
          %s230 = sand.u32 %s23, 1
          %s231 = scalar_lea.sflag [#allocation8], %s230
          %s232 = sand.u32 %s83, 1
          %s233 = smul.addr %s232, 32
          %s234 = scalar_lea.vmem [#allocation7], %s233
          %s235 = sadd.s32 %s30, %s31
          %p236 = scmp.lt.s32.totalorder %s235, 0
          %s237 = scalar_select %p236, %s235, 0
          %s238 = smul.u32 4, %s237
          %240 = vsyncadd %s231, 0
          %s241 = smul.addr %s238, 8
          %s242 = scalar_lea.hbm %s1, %s241
          %s243 = sshll.u32 %s242, 4
          %s244 = int_to_ptr.hbm [resolvable:$true] %s243
          %s245 = sshll.u32 %s234, 4
          %s246 = int_to_ptr.vmem [resolvable:$true] %s245
          %251 = dma.hbm_to_vmem [thread:$0]  %s244, 512, %s246, %s231, 128, 128, 8
        $region24: #{tpu_custom_call.1} parent=15 // pred_fallthru
          _
        // Predicated region
        $region25: #{tpu_custom_call.1} parent=15 // pred_check
          %p252 = pneg %p125
        $region26: #{tpu_custom_call.1} parent=15 // pred_check_branch
          %254 = sbr.rel (%p252) target = $region28
        $region27: #{tpu_custom_call.1} parent=15 // pred_region
          %s255 = sand.u32 %s23, 1
          %s256 = scalar_lea.sflag [#allocation8], %s255
          %s257 = sand.u32 %s115, 1
          %s258 = smul.addr %s257, 32
          %s259 = scalar_lea.vmem [#allocation9], %s258
          %s260 = sadd.s32 %s30, %s31
          %p261 = scmp.lt.s32.totalorder %s260, 0
          %s262 = scalar_select %p261, %s260, 0
          %s263 = smul.u32 4, %s262
          %265 = vsyncadd %s256, 0
          %s266 = smul.addr %s263, 8
          %s267 = scalar_lea.hbm %s2, %s266
          %s268 = sshll.u32 %s267, 4
          %s269 = int_to_ptr.hbm [resolvable:$true] %s268
          %s270 = sshll.u32 %s259, 4
          %s271 = int_to_ptr.vmem [resolvable:$true] %s270
          %276 = dma.hbm_to_vmem [thread:$0]  %s269, 512, %s271, %s256, 128, 128, 8
        $region28: #{tpu_custom_call.1} parent=15 // pred_fallthru
          _
      $region16: #{tpu_custom_call.1} parent=5 // pred_fallthru
        _
      %p277 = scmp.le.s32.totalorder 1, %s23
      %p278 = scmp.lt.s32.totalorder %s23, 3
      %p279 = pnand %p277, %p278
      %p280 = pneg %p279
      // Predicated region
      $region29: #{tpu_custom_call.1} parent=5 // pred_check
        _
      $region30: #{tpu_custom_call.1} parent=5 // pred_check_branch
        %282 = sbr.rel (%p279) target = $region32
      $region31: #{tpu_custom_call.1} parent=5 // pred_region
        %s283 = ssub.s32 %s23, 1
        %s284 = sand.u32 %s54, 1
        %s285 = scalar_lea.sflag [#allocation5], %s284
        %s286 = sand.u32 %s54, 1
        %s287 = smul.addr %s286, 32
        %s288 = scalar_lea.vmem [#allocation4], %s287
        // Predicated region
        $region33: #{tpu_custom_call.1} parent=31 // pred_check
          %p289 = pneg %p67
        $region34: #{tpu_custom_call.1} parent=31 // pred_check_branch
          %291 = sbr.rel (%p289) target = $region36
        $region35: #{tpu_custom_call.1} parent=31 // pred_region
          %293 = dma.done %s285, 512
        $region36: #{tpu_custom_call.1} parent=31 // pred_fallthru
          _
        %s294 = sand.u32 %s28, 1
        %s295 = scalar_lea.sflag [#allocation8], %s294
        %s296 = sand.u32 %s86, 1
        %s297 = smul.addr %s296, 32
        %s298 = scalar_lea.vmem [#allocation7], %s297
        // Predicated region
        $region37: #{tpu_custom_call.1} parent=31 // pred_check
          %p299 = pneg %p99
        $region38: #{tpu_custom_call.1} parent=31 // pred_check_branch
          %301 = sbr.rel (%p299) target = $region40
        $region39: #{tpu_custom_call.1} parent=31 // pred_region
          %303 = dma.done %s295, 512
        $region40: #{tpu_custom_call.1} parent=31 // pred_fallthru
          _
        %s304 = sand.u32 %s28, 1
        %s305 = scalar_lea.sflag [#allocation8], %s304
        %s306 = sand.u32 %s118, 1
        %s307 = smul.addr %s306, 32
        %s308 = scalar_lea.vmem [#allocation9], %s307
        // Predicated region
        $region41: #{tpu_custom_call.1} parent=31 // pred_check
          %p309 = pneg %p131
        $region42: #{tpu_custom_call.1} parent=31 // pred_check_branch
          %311 = sbr.rel (%p309) target = $region44
        $region43: #{tpu_custom_call.1} parent=31 // pred_region
          %313 = dma.done %s305, 512
        $region44: #{tpu_custom_call.1} parent=31 // pred_fallthru
          _
        %s314 = sand.u32 %s54, 1
        %s315 = scalar_lea.sflag [#allocation5], %s314
        %s316 = sand.u32 %s54, 1
        %s317 = smul.addr %s316, 32
        %s318 = scalar_lea.vmem [#allocation4], %s317
        %p319 = pneg %p67
        %p320 = pneg %p64
        %s321 = sand.u32 %s28, 1
        %s322 = scalar_lea.sflag [#allocation8], %s321
        %s323 = sand.u32 %s86, 1
        %s324 = smul.addr %s323, 32
        %s325 = scalar_lea.vmem [#allocation7], %s324
        %p326 = pneg %p99
        %p327 = pneg %p96
        %s328 = sand.u32 %s28, 1
        %s329 = scalar_lea.sflag [#allocation8], %s328
        %s330 = sand.u32 %s118, 1
        %s331 = smul.addr %s330, 32
        %s332 = scalar_lea.vmem [#allocation9], %s331
        %p333 = pneg %p131
        %p334 = pneg %p128
        %p335 = pneg %p157
        %p336 = pneg %p154
        %s337 = sand.u32 %s144, 1
        %s338 = scalar_lea.sflag [#allocation6], %s337
        %s339 = sand.u32 %s144, 1
        %s340 = smul.addr %s339, 8
        %s341 = scalar_lea.vmem [#allocation10], %s340
        %p342 = pneg %p183
        %p343 = pneg %p180
        %s344 = sand.u32 %s170, 1
        %s345 = scalar_lea.sflag [#allocation12], %s344
        %s346 = sand.u32 %s170, 1
        %s347 = smul.addr %s346, 8
        %s348 = scalar_lea.vmem [#allocation11], %s347
        %s349 = sadd.s32 %s32, %s33
        %p350 = scmp.lt.s32.totalorder %s349, 0
        %s351 = scalar_select %p350, %s349, 0
        %s352 = smul.u32 4, %s351
        %s353 = sadd.s32 %s32, %s33
        %p354 = scmp.lt.s32.totalorder %s353, 0
        %s355 = scalar_select %p354, %s353, 0
        %s356 = smul.u32 4, %s355
        %s357 = sadd.s32 %s32, %s33
        %p358 = scmp.lt.s32.totalorder %s357, 0
        %s359 = scalar_select %p358, %s357, 0
        %s360 = smul.u32 4, %s359
        %p361 = scmp.eq.s32.totalorder %s33, 0
        // Predicated region
        $region45: #{tpu_custom_call.1} parent=31 // pred_check
          %p362 = pneg %p361
        $region46: #{tpu_custom_call.1} parent=31 // pred_check_branch
          %364 = sbr.rel (%p362) target = $region48
        $region47: #{tpu_custom_call.1} parent=31 // pred_region
          %365 = vst [vmem:[#allocation2] sm:$0xff] 0.0
          %366 = vst [vmem:[#allocation2 + $0x8] sm:$0xff] 0.0
          %367 = vst [vmem:[#allocation2 + $0x10] sm:$0xff] 0.0
          %368 = vst [vmem:[#allocation2 + $0x18] sm:$0xff] 0.0
          %369 = vst [vmem:[#allocation3] sm:$0xff] 0.0
          %370 = vst [vmem:[#allocation3 + $0x8] sm:$0xff] 0.0
          %371 = vst [vmem:[#allocation3 + $0x10] sm:$0xff] 0.0
          %372 = vst [vmem:[#allocation3 + $0x18] sm:$0xff] 0.0
        $region48: #{tpu_custom_call.1} parent=31 // pred_fallthru
          _
        %v373 = vld [vmem:[%s288] sm:$0xff]
        %v374 = vld [vmem:[%s288 + $0x8] sm:$0xff]
        %v375 = vld [vmem:[%s288 + $0x10] sm:$0xff]
        %v376 = vld [vmem:[%s288 + $0x18] sm:$0xff]
        %v377 = vld [vmem:[%s298] sm:$0xff]
        %v378 = vld [vmem:[%s298 + $0x8] sm:$0xff]
        %v379 = vld [vmem:[%s298 + $0x10] sm:$0xff]
        %v380 = vld [vmem:[%s298 + $0x18] sm:$0xff]
        %v381 = vld [vmem:[%s308] sm:$0xff]
        %v382 = vld [vmem:[%s308 + $0x8] sm:$0xff]
        %v383 = vld [vmem:[%s308 + $0x10] sm:$0xff]
        %v384 = vld [vmem:[%s308 + $0x18] sm:$0xff]
        %v385 = vmax.f32 %v373, 0.0
        %v386 = vmax.f32 %v374, 0.0
        %v387 = vmax.f32 %v375, 0.0
        %v388 = vmax.f32 %v376, 0.0
        %v389 = vmul.f32 %v373, %v377
        %v390 = vmul.f32 %v374, %v378
        %v391 = vmul.f32 %v375, %v379
        %v392 = vmul.f32 %v376, %v380
        %v393 = vsub.f32 %v385, %v389
        %v394 = vsub.f32 %v386, %v390
        %v395 = vsub.f32 %v387, %v391
        %v396 = vsub.f32 %v388, %v392
        %v397 = vand.u32 2147483647, %v373
        %v398 = vand.u32 2147483647, %v374
        %v399 = vand.u32 2147483647, %v375
        %v400 = vand.u32 2147483647, %v376
        %v401 = vsub.f32 0.0, %v397
        %v402 = vsub.f32 0.0, %v398
        %v403 = vsub.f32 0.0, %v399
        %v404 = vsub.f32 0.0, %v400
        %v405 = vmul.f32 %v401, 1.442695
        %v406 = vpow.pop %v405
        %v407 = vmul.f32 %v402, 1.442695
        %v408 = vpow.pop %v407
        %v409 = vmul.f32 %v403, 1.442695
        %v410 = vpow.pop %v409
        %v411 = vmul.f32 %v404, 1.442695
        %v412 = vpow.pop %v411
        %v413 = vadd.f32 %v406, 1.0
        %v414 = vadd.f32 %v408, 1.0
        %v415 = vadd.f32 %v410, 1.0
        %v416 = vadd.f32 %v412, 1.0
        %v417 = vlog2.pop %v413
        %v418 = vmul.f32 %v417, 0.6931472
        %v419 = vlog2.pop %v414
        %v420 = vmul.f32 %v419, 0.6931472
        %v421 = vlog2.pop %v415
        %v422 = vmul.f32 %v421, 0.6931472
        %v423 = vlog2.pop %v416
        %v424 = vmul.f32 %v423, 0.6931472
        %v425 = vadd.f32 %v393, %v418
        %v426 = vadd.f32 %v394, %v420
        %v427 = vadd.f32 %v395, %v422
        %v428 = vadd.f32 %v396, %v424
        %v429 = vlaneseq
        %v430 = vand.u32 %v429, 127
        %vm431 = vcmp.ge.s32.totalorder %v430, 0
        %vm432 = vcmp.lt.s32.totalorder %v430, 32
        %vm433 = vmand %vm431, %vm432
        %v434 = vsel %vm433, %v381, 0.0
        %v435 = vsel %vm433, %v382, 0.0
        %v436 = vsel %vm433, %v383, 0.0
        %v437 = vsel %vm433, %v384, 0.0
        %438 = vadd.xlane.f32.xlu0 %v434
        %v439 = vpop.xlane.xlu0 %438
        %440 = vadd.xlane.f32.xlu0 %v435
        %v441 = vpop.xlane.xlu0 %440
        %442 = vadd.xlane.f32.xlu0 %v436
        %v443 = vpop.xlane.xlu0 %442
        %444 = vadd.xlane.f32.xlu0 %v437
        %v445 = vpop.xlane.xlu0 %444
        %v446 = vsel %vm433, %v439, 0.0
        %v447 = vsel %vm433, %v441, 0.0
        %v448 = vsel %vm433, %v443, 0.0
        %v449 = vsel %vm433, %v445, 0.0
        %v450 = vadd.f32 %v446, 0.0
        %v451 = vadd.f32 %v447, 0.0
        %v452 = vadd.f32 %v448, 0.0
        %v453 = vadd.f32 %v449, 0.0
        %vm454 = vcmp.ge.s32.totalorder %v430, 32
        %vm455 = vcmp.lt.s32.totalorder %v430, 64
        %vm456 = vmand %vm454, %vm455
        %v457 = vsel %vm456, %v381, 0.0
        %v458 = vsel %vm456, %v382, 0.0
        %v459 = vsel %vm456, %v383, 0.0
        %v460 = vsel %vm456, %v384, 0.0
        %461 = vadd.xlane.f32.xlu0 %v457
        %v462 = vpop.xlane.xlu0 %461
        %463 = vadd.xlane.f32.xlu0 %v458
        %v464 = vpop.xlane.xlu0 %463
        %465 = vadd.xlane.f32.xlu0 %v459
        %v466 = vpop.xlane.xlu0 %465
        %467 = vadd.xlane.f32.xlu0 %v460
        %v468 = vpop.xlane.xlu0 %467
        %v469 = vsel %vm456, %v462, 0.0
        %v470 = vsel %vm456, %v464, 0.0
        %v471 = vsel %vm456, %v466, 0.0
        %v472 = vsel %vm456, %v468, 0.0
        %v473 = vadd.f32 %v450, %v469
        %v474 = vadd.f32 %v451, %v470
        %v475 = vadd.f32 %v452, %v471
        %v476 = vadd.f32 %v453, %v472
        %vm477 = vcmp.ge.s32.totalorder %v430, 64
        %vm478 = vcmp.lt.s32.totalorder %v430, 96
        %vm479 = vmand %vm477, %vm478
        %v480 = vsel %vm479, %v381, 0.0
        %v481 = vsel %vm479, %v382, 0.0
        %v482 = vsel %vm479, %v383, 0.0
        %v483 = vsel %vm479, %v384, 0.0
        %484 = vadd.xlane.f32.xlu0 %v480
        %v485 = vpop.xlane.xlu0 %484
        %486 = vadd.xlane.f32.xlu0 %v481
        %v487 = vpop.xlane.xlu0 %486
        %488 = vadd.xlane.f32.xlu0 %v482
        %v489 = vpop.xlane.xlu0 %488
        %490 = vadd.xlane.f32.xlu0 %v483
        %v491 = vpop.xlane.xlu0 %490
        %v492 = vsel %vm479, %v485, 0.0
        %v493 = vsel %vm479, %v487, 0.0
        %v494 = vsel %vm479, %v489, 0.0
        %v495 = vsel %vm479, %v491, 0.0
        %v496 = vadd.f32 %v473, %v492
        %v497 = vadd.f32 %v474, %v493
        %v498 = vadd.f32 %v475, %v494
        %v499 = vadd.f32 %v476, %v495
        %vm500 = vcmp.ge.s32.totalorder %v430, 96
        %vm501 = vcmp.lt.s32.totalorder %v430, 128
        %vm502 = vmand %vm500, %vm501
        %v503 = vsel %vm502, %v381, 0.0
        %v504 = vsel %vm502, %v382, 0.0
        %v505 = vsel %vm502, %v383, 0.0
        %v506 = vsel %vm502, %v384, 0.0
        %507 = vadd.xlane.f32.xlu0 %v503
        %v508 = vpop.xlane.xlu0 %507
        %509 = vadd.xlane.f32.xlu0 %v504
        %v510 = vpop.xlane.xlu0 %509
        %511 = vadd.xlane.f32.xlu0 %v505
        %v512 = vpop.xlane.xlu0 %511
        %513 = vadd.xlane.f32.xlu0 %v506
        %v514 = vpop.xlane.xlu0 %513
        %v515 = vsel %vm502, %v508, 0.0
        %v516 = vsel %vm502, %v510, 0.0
        %v517 = vsel %vm502, %v512, 0.0
        %v518 = vsel %vm502, %v514, 0.0
        %v519 = vadd.f32 %v496, %v515
        %v520 = vadd.f32 %v497, %v516
        %v521 = vadd.f32 %v498, %v517
        %v522 = vadd.f32 %v499, %v518
        %v523 = vand.u32 %v430, 31
        %vm524 = vcmp.eq.s32.totalorder %v523, 0
        %s525 = sadd.s32 %s32, %s33
        %s526 = smul.u32 %s525, 32
        %v527 = vlaneseq
        %v528 = vshrl.u32 %v527, 7
        %v529 = vadd.s32 %v528, 8
        %v530 = vadd.s32 %v528, 16
        %v531 = vadd.s32 %v528, 24
        %v532 = vstv %s526
        %v533 = vadd.s32 %v532, %v528
        %v534 = vadd.s32 %v532, %v529
        %v535 = vadd.s32 %v532, %v530
        %v536 = vadd.s32 %v532, %v531
        %vm537 = vcmp.lt.s32.totalorder %v533, 32
        %vm538 = vcmp.lt.s32.totalorder %v534, 32
        %vm539 = vcmp.lt.s32.totalorder %v535, 32
        %vm540 = vcmp.lt.s32.totalorder %v536, 32
        %vm541 = vcmp.ne.f32.partialorder %v519, 0.0
        %vm542 = vcmp.ne.f32.partialorder %v520, 0.0
        %vm543 = vcmp.ne.f32.partialorder %v521, 0.0
        %vm544 = vcmp.ne.f32.partialorder %v522, 0.0
        %vm545 = vmand %vm541, %vm537
        %vm546 = vmand %vm542, %vm538
        %vm547 = vmand %vm543, %vm539
        %vm548 = vmand %vm544, %vm540
        %v549 = vld [vmem:[#allocation2] sm:$0xff]
        %v550 = vld [vmem:[#allocation2 + $0x8] sm:$0xff]
        %v551 = vld [vmem:[#allocation2 + $0x10] sm:$0xff]
        %v552 = vld [vmem:[#allocation2 + $0x18] sm:$0xff]
        %v553 = vsel %vm545, %v425, 0.0
        %v554 = vsel %vm546, %v426, 0.0
        %v555 = vsel %vm547, %v427, 0.0
        %v556 = vsel %vm548, %v428, 0.0
        %v557 = vadd.f32 %v549, %v553
        %v558 = vadd.f32 %v550, %v554
        %v559 = vadd.f32 %v551, %v555
        %v560 = vadd.f32 %v552, %v556
        %561 = vst [vmem:[#allocation2] sm:$0xff] %v557
        %562 = vst [vmem:[#allocation2 + $0x8] sm:$0xff] %v558
        %563 = vst [vmem:[#allocation2 + $0x10] sm:$0xff] %v559
        %564 = vst [vmem:[#allocation2 + $0x18] sm:$0xff] %v560
        %v565 = vld [vmem:[#allocation3] sm:$0xff]
        %v566 = vld [vmem:[#allocation3 + $0x8] sm:$0xff]
        %v567 = vld [vmem:[#allocation3 + $0x10] sm:$0xff]
        %v568 = vld [vmem:[#allocation3 + $0x18] sm:$0xff]
        %vm569 = vmand %vm545, %vm524
        %vm570 = vmand %vm546, %vm524
        %vm571 = vmand %vm547, %vm524
        %vm572 = vmand %vm548, %vm524
        %v573 = vsel %vm569, 1.0, 0.0
        %v574 = vsel %vm570, 1.0, 0.0
        %v575 = vsel %vm571, 1.0, 0.0
        %v576 = vsel %vm572, 1.0, 0.0
        %v577 = vadd.f32 %v565, %v573
        %v578 = vadd.f32 %v566, %v574
        %v579 = vadd.f32 %v567, %v575
        %v580 = vadd.f32 %v568, %v576
        %581 = vst [vmem:[#allocation3] sm:$0xff] %v577
        %582 = vst [vmem:[#allocation3 + $0x8] sm:$0xff] %v578
        %583 = vst [vmem:[#allocation3 + $0x10] sm:$0xff] %v579
        %584 = vst [vmem:[#allocation3 + $0x18] sm:$0xff] %v580
        // Predicated region
        $region49: #{tpu_custom_call.1} parent=31 // pred_check
          %p585 = pneg %p361
        $region50: #{tpu_custom_call.1} parent=31 // pred_check_branch
          %587 = sbr.rel (%p585) target = $region52
        $region51: #{tpu_custom_call.1} parent=31 // pred_region
          %v588 = vld [vmem:[#allocation2] sm:$0xff]
          %v589 = vld [vmem:[#allocation2 + $0x8] sm:$0xff]
          %v590 = vld [vmem:[#allocation2 + $0x10] sm:$0xff]
          %v591 = vld [vmem:[#allocation2 + $0x18] sm:$0xff]
          %v592 = vadd.f32 %v588, %v589
          %v593 = vadd.f32 %v592, %v590
          %v594 = vadd.f32 %v593, %v591
          %595 = vadd.xlane.f32.xlu0 %v594
          %v596 = vpop.xlane.xlu0 %595
          %v597 = vrot.slane %v596, 4
          %v598 = vadd.f32 %v596, %v597
          %v599 = vrot.slane %v598, 2
          %v600 = vadd.f32 %v598, %v599
          %v601 = vrot.slane %v600, 1
          %v602 = vadd.f32 %v600, %v601
          %s603 = vtos %v602
          %v604 = vld [vmem:[#allocation3] sm:$0xff]
          %v605 = vld [vmem:[#allocation3 + $0x8] sm:$0xff]
          %v606 = vld [vmem:[#allocation3 + $0x10] sm:$0xff]
          %v607 = vld [vmem:[#allocation3 + $0x18] sm:$0xff]
          %v608 = vadd.f32 %v604, %v605
          %v609 = vadd.f32 %v608, %v606
          %v610 = vadd.f32 %v609, %v607
          %611 = vadd.xlane.f32.xlu0 %v610
          %v612 = vpop.xlane.xlu0 %611
          %v613 = vrot.slane %v612, 4
          %v614 = vadd.f32 %v612, %v613
          %v615 = vrot.slane %v614, 2
          %v616 = vadd.f32 %v614, %v615
          %v617 = vrot.slane %v616, 1
          %v618 = vadd.f32 %v616, %v617
          %s619 = vtos %v618
          %v620 = vstv %s603
          %621 = vst [vmem:[%s341] sm:$0xff] %v620
          %v622 = vstv %s619
          %623 = vst [vmem:[%s348] sm:$0xff] %v622
        $region52: #{tpu_custom_call.1} parent=31 // pred_fallthru
          _
        %s624 = sand.u32 %s144, 1
        %s625 = scalar_lea.sflag [#allocation6], %s624
        %s626 = sand.u32 %s144, 1
        %s627 = smul.addr %s626, 8
        %s628 = scalar_lea.vmem [#allocation10], %s627
        %s629 = sand.u32 %s170, 1
        %s630 = scalar_lea.sflag [#allocation12], %s629
        %s631 = sand.u32 %s170, 1
        %s632 = smul.addr %s631, 8
        %s633 = scalar_lea.vmem [#allocation11], %s632
        // Predicated region
        $region53: #{tpu_custom_call.1} parent=31 // pred_check
          %p634 = pneg %p154
        $region54: #{tpu_custom_call.1} parent=31 // pred_check_branch
          %636 = sbr.rel (%p634) target = $region56
        $region55: #{tpu_custom_call.1} parent=31 // pred_region
          %638 = vsyncadd %s625, 0
          %s639 = smul.addr %s32, 8
          %s640 = scalar_lea.hbm %s3, %s639
          %s642 = sshll.u32 %s628, 4
          %s643 = int_to_ptr.vmem [resolvable:$true] %s642
          %s644 = sshll.u32 %s640, 4
          %s645 = int_to_ptr.hbm [resolvable:$true] %s644
          %647 = dma.vmem_to_hbm [thread:$0]  %s643, 128, %s645, %s625
        $region56: #{tpu_custom_call.1} parent=31 // pred_fallthru
          _
        // Predicated region
        $region57: #{tpu_custom_call.1} parent=31 // pred_check
          %p648 = pneg %p180
        $region58: #{tpu_custom_call.1} parent=31 // pred_check_branch
          %650 = sbr.rel (%p648) target = $region60
        $region59: #{tpu_custom_call.1} parent=31 // pred_region
          %652 = vsyncadd %s630, 0
          %s653 = smul.addr %s32, 8
          %s654 = scalar_lea.hbm %s4, %s653
          %s656 = sshll.u32 %s633, 4
          %s657 = int_to_ptr.vmem [resolvable:$true] %s656
          %s658 = sshll.u32 %s654, 4
          %s659 = int_to_ptr.hbm [resolvable:$true] %s658
          %661 = dma.vmem_to_hbm [thread:$0]  %s657, 128, %s659, %s630
        $region60: #{tpu_custom_call.1} parent=31 // pred_fallthru
          _
      $region32: #{tpu_custom_call.1} parent=5 // pred_fallthru
        _
      %p662 = scmp.le.s32.totalorder 2, %s23
      // Predicated region
      $region61: #{tpu_custom_call.1} parent=5 // pred_check
        %p663 = pneg %p662
      $region62: #{tpu_custom_call.1} parent=5 // pred_check_branch
        %665 = sbr.rel (%p663) target = $region64
      $region63: #{tpu_custom_call.1} parent=5 // pred_region
        %s666 = ssub.s32 %s23, 2
        // Predicated region
        $region65: #{tpu_custom_call.1} parent=63 // pred_check
          %p667 = pneg %p160
        $region66: #{tpu_custom_call.1} parent=63 // pred_check_branch
          %669 = sbr.rel (%p667) target = $region68
        $region67: #{tpu_custom_call.1} parent=63 // pred_region
          %s670 = sand.u32 %s145, 1
          %s671 = scalar_lea.sflag [#allocation6], %s670
          %s672 = sand.u32 %s145, 1
          %s673 = smul.addr %s672, 8
          %s674 = scalar_lea.vmem [#allocation10], %s673
          %676 = dma.done %s671, 128
        $region68: #{tpu_custom_call.1} parent=63 // pred_fallthru
          _
        // Predicated region
        $region69: #{tpu_custom_call.1} parent=63 // pred_check
          %p677 = pneg %p186
        $region70: #{tpu_custom_call.1} parent=63 // pred_check_branch
          %679 = sbr.rel (%p677) target = $region72
        $region71: #{tpu_custom_call.1} parent=63 // pred_region
          %s680 = sand.u32 %s171, 1
          %s681 = scalar_lea.sflag [#allocation12], %s680
          %s682 = sand.u32 %s171, 1
          %s683 = smul.addr %s682, 8
          %s684 = scalar_lea.vmem [#allocation11], %s683
          %686 = dma.done %s681, 128
        $region72: #{tpu_custom_call.1} parent=63 // pred_fallthru
          _
      $region64: #{tpu_custom_call.1} parent=5 // pred_fallthru
        _
    $region6: #{tpu_custom_call.1} parent=1 // loop_footer
      %s27 = sadd.s32 1, %s23
    $region7: #{tpu_custom_call.1} parent=1 // loop_footer_branch
      %22 = sbr.rel target = $region3
    $region8: #{tpu_custom_call.1} parent=1 // loop_exit
      _
    %687 = vsyncpa [#allocation5], 1
    %s688 = scalar_lea.sflag [#allocation5], 1
    %689 = vsyncpa %s688, 1
    %690 = vsyncpa [#allocation8], 1
    %s691 = scalar_lea.sflag [#allocation8], 1
    %692 = vsyncpa %s691, 1
    %693 = vsyncpa [#allocation6], 1
    %s694 = scalar_lea.sflag [#allocation6], 1
    %695 = vsyncpa %s694, 1
    %696 = vsyncpa [#allocation12], 1
    %s697 = scalar_lea.sflag [#allocation12], 1
    %698 = vsyncpa %s697, 1

</llo_original>
